<compile_context>
chip_gen: v5e
topology: v5e:2x2
jax: 0.10.0
libtpu: 0.0.40
codegen_flags: <defaults>
</compile_context>

<pallas_src>
from functools import partial

import jax
import jax.numpy as jnp
from jax.experimental import pallas as pl
from jax.experimental.pallas import tpu as pltpu


def _fmix32(h):
    """murmur3 finalizer on int32.

    Right shifts are followed by a mask of the surviving bit-width, so the result
    is identical whether `>>` lowers to an arithmetic or a logical shift.  All
    intermediates stay int32 (wrapping multiplies are well defined in XLA).
    """
    h = h ^ ((h >> 16) & jnp.int32(0xFFFF))
    h = h * jnp.int32(-2048144789)          # 0x85EBCA6B
    h = h ^ ((h >> 13) & jnp.int32(0x7FFFF))
    h = h * jnp.int32(-1028477387)          # 0xC2B2AE35
    h = h ^ ((h >> 16) & jnp.int32(0xFFFF))
    return h


def _gumbel_kernel(seed_ref, x_ref, o_ref, *, gumbel_lambda, eps, transpose):
    b = pl.program_id(0)          # source batch index
    t = pl.program_id(1)          # row-tile index
    g = pl.program_id(2)          # repeat (gumbel_size) index -- innermost
    n_tiles = pl.num_programs(1)
    G = pl.num_programs(2)

    x = x_ref[...].astype(jnp.float32)        # (1, TN, M)
    if transpose:
        x = jnp.swapaxes(x, 1, 2)             # (1, M, TN) -- fused transpose

    shape = x.shape
    tile_elems = shape[1] * shape[2]

    # Unique per-element counter over the whole (B*G, P, Q) output.
    # NOTE: int32 counter -- assumes total padded element count < 2^31
    # (fine for QAP-sized matrices; use a second hash round of (rep, t) if not).
    rep = b * G + g                                       # output batch row
    base = (rep * n_tiles + t) * tile_elems
    row = jax.lax.broadcasted_iota(jnp.int32, shape, 1)
    col = jax.lax.broadcasted_iota(jnp.int32, shape, 2)
    idx = base + row * shape[2] + col

    # Key the hash with the seed (golden-ratio multiply, wraps) then avalanche.
    h = idx ^ (seed_ref[0] * jnp.int32(-1640531527))      # 0x9E3779B9
    h = _fmix32(h)

    # Low 24 bits -> uniform in [0, 1).  Non-negative by construction, exact in
    # float32, no bitcasts involved -> always finite downstream.
    u = (h & jnp.int32(0x00FFFFFF)).astype(jnp.float32) * jnp.float32(1.0 / (1 << 24))

    # sample_gumbel: -log(-log(u + eps) + eps)
    noise = -jnp.log(-jnp.log(u + jnp.float32(eps)) + jnp.float32(eps))

    o_ref[...] = (x + jnp.float32(gumbel_lambda) * noise).astype(o_ref.dtype)


def gumbel_forward(X, seed=0, gumbel_size=1, gumbel_lambda=0.05, eps=1e-20):
    assert X.ndim == 3, f"Error: x.shape = {X.shape}"
    B, N, M = X.shape
    transpose = N > M                      # torch: X = X.transpose(1, 2)
    G = int(gumbel_size)
    itemsize = jnp.dtype(X.dtype).itemsize

    # Row-tile along the input's N axis; ~<= 2 MiB per input buffer keeps
    # double-buffered in+out well inside the scoped-VMEM default on every
    # generation (v7x included).  TODO(synk): grow to ~4-6 MiB on v6e/v5e via
    # pltpu.get_tpu_info() + vmem_limit_bytes for a few % less per-step overhead.
    budget_rows = max(1, (2 * 1024 * 1024) // max(1, M * max(itemsize, 4)))
    if N <= budget_rows:
        TN = N
    else:
        # transposed case: TN becomes the output's lane dim -> multiple of 128;
        # direct case: TN is a sublane dim -> multiple of 8.
        align = 128 if transpose else 8
        TN = max(align, (budget_rows // align) * align)
    T = pl.cdiv(N, TN)   # ragged last tile (if any) handled by Pallas OOB masking

    if transpose:
        # output is (B*G, M, N); the kernel transposes each (TN, M) tile.
        in_spec = pl.BlockSpec((1, TN, M), lambda b, t, g, seed: (b, t, 0))
        out_spec = pl.BlockSpec((1, M, TN), lambda b, t, g, seed: (b * G + g, 0, t))
        out_shape = jax.ShapeDtypeStruct((B * G, M, N), X.dtype)
    else:
        in_spec = pl.BlockSpec((1, TN, M), lambda b, t, g, seed: (b, t, 0))
        out_spec = pl.BlockSpec((1, TN, M), lambda b, t, g, seed: (b * G + g, t, 0))
        out_shape = jax.ShapeDtypeStruct((B * G, N, M), X.dtype)

    seed_arr = jnp.array([seed], dtype=jnp.int32)
    kernel = partial(_gumbel_kernel, gumbel_lambda=float(gumbel_lambda),
                     eps=float(eps), transpose=transpose)

    out = pl.pallas_call(
        kernel,
        out_shape=out_shape,
        grid_spec=pltpu.PrefetchScalarGridSpec(
            num_scalar_prefetch=1,                 # seed lives in SMEM
            grid=(B, T, G),                        # G innermost: input tile stays
            in_specs=[in_spec],                    #   resident across all G copies
            out_specs=out_spec,
        ),
        compiler_params=pltpu.CompilerParams(
            dimension_semantics=("parallel", "parallel", "arbitrary"),
        ),
    )(seed_arr, X)

    assert out.shape[0] == B * G
    return out


if __name__ == "__main__":
    key = jax.random.PRNGKey(0)
    # (B=2, N=16, M=8): N > M, so the forward uses the transposed (2, 8, 16) layout.
    X = jax.random.normal(key, (2, 16, 8), dtype=jnp.float32)

    gumbel_size = 3
    gumbel_lambda = 0.05

    out = gumbel_forward(X, seed=0, gumbel_size=gumbel_size,
                         gumbel_lambda=gumbel_lambda)
    out = jax.block_until_ready(out)

    # Reference structure: repeat_interleave of the transposed input.
    X_t = jnp.swapaxes(X, 1, 2)
    X_rep = jnp.repeat(X_t, gumbel_size, axis=0)

    assert out.shape == X_rep.shape == (2 * gumbel_size, 8, 16)
    assert bool(jnp.all(jnp.isfinite(out)))

    # Output = input + lambda * gumbel noise; with 24-bit uniforms the noise is
    # bounded in roughly [-3.9, 16.7], so lambda * noise stays well below 2.
    diff = out - X_rep
    assert bool(jnp.all(jnp.abs(diff) < 2.0))
    # Noise must actually be present and differ across the repeated copies.
    assert bool(jnp.any(jnp.abs(diff) > 1e-6))
    assert not bool(jnp.allclose(out[0], out[1]))

    print("KERNEL_OK")
</pallas_src>

<mosaic_0001>
module attributes {stable_mosaic.version = 11 : i64} {
  func.func @_gumbel_kernel(%arg0: i32, %arg1: i32, %arg2: i32, %arg3: memref<1xi32, #tpu.memory_space<smem>>, %arg4: memref<1x16x8xf32, #tpu.memory_space<vmem>>, %arg5: memref<1x8x16xf32, #tpu.memory_space<vmem>>) attributes {dimension_semantics = [#tpu.dimension_semantics<parallel>, #tpu.dimension_semantics<parallel>, #tpu.dimension_semantics<arbitrary>], iteration_bounds = array<i64: 2, 1, 3>, scalar_prefetch = 1 : i64, scratch_operands = 0 : i64, tpu.core_type = #tpu.core_type<tc>, window_params = [{transform_indices = @transform_0, window_bounds = array<i64: 1, 16, 8>}, {transform_indices = @transform_1, window_bounds = array<i64: 1, 8, 16>}]} {
    %c0 = arith.constant 0 : index
    %c0_0 = arith.constant 0 : index
    %c0_1 = arith.constant 0 : index
    %0 = vector.load %arg4[%c0, %c0_0, %c0_1] : memref<1x16x8xf32, #tpu.memory_space<vmem>>, vector<1x16x8xf32>
    %1 = tpu.transpose %0, [0, 2, 1] : vector<1x16x8xf32> -> vector<1x8x16xf32>
    %c3_i32 = arith.constant 3 : i32
    %2 = arith.muli %arg0, %c3_i32 : i32
    %3 = arith.addi %2, %arg2 : i32
    %c1_i32 = arith.constant 1 : i32
    %4 = arith.muli %3, %c1_i32 : i32
    %5 = arith.addi %4, %arg1 : i32
    %c128_i32 = arith.constant 128 : i32
    %6 = arith.muli %5, %c128_i32 : i32
    %7 = tpu.iota {dimensions = array<i32: 1>} : vector<1x8x16xi32>
    %8 = tpu.iota {dimensions = array<i32: 2>} : vector<1x8x16xi32>
    %c16_i32 = arith.constant 16 : i32
    %9 = vector.broadcast %c16_i32 : i32 to vector<1x8x16xi32>
    %10 = arith.muli %7, %9 : vector<1x8x16xi32>
    %11 = vector.broadcast %6 : i32 to vector<1x8x16xi32>
    %12 = arith.addi %11, %10 : vector<1x8x16xi32>
    %13 = arith.addi %12, %8 : vector<1x8x16xi32>
    %c0_2 = arith.constant 0 : index
    %14 = memref.load %arg3[%c0_2] : memref<1xi32, #tpu.memory_space<smem>>
    %c-1640531527_i32 = arith.constant -1640531527 : i32
    %15 = arith.muli %14, %c-1640531527_i32 : i32
    %16 = vector.broadcast %15 : i32 to vector<1x8x16xi32>
    %17 = arith.xori %13, %16 : vector<1x8x16xi32>
    %c16_i32_3 = arith.constant 16 : i32
    %18 = vector.broadcast %c16_i32_3 : i32 to vector<1x8x16xi32>
    %19 = arith.shrsi %17, %18 : vector<1x8x16xi32>
    %c65535_i32 = arith.constant 65535 : i32
    %20 = vector.broadcast %c65535_i32 : i32 to vector<1x8x16xi32>
    %21 = arith.andi %19, %20 : vector<1x8x16xi32>
    %22 = arith.xori %17, %21 : vector<1x8x16xi32>
    %c-2048144789_i32 = arith.constant -2048144789 : i32
    %23 = vector.broadcast %c-2048144789_i32 : i32 to vector<1x8x16xi32>
    %24 = arith.muli %22, %23 : vector<1x8x16xi32>
    %c13_i32 = arith.constant 13 : i32
    %25 = vector.broadcast %c13_i32 : i32 to vector<1x8x16xi32>
    %26 = arith.shrsi %24, %25 : vector<1x8x16xi32>
    %c524287_i32 = arith.constant 524287 : i32
    %27 = vector.broadcast %c524287_i32 : i32 to vector<1x8x16xi32>
    %28 = arith.andi %26, %27 : vector<1x8x16xi32>
    %29 = arith.xori %24, %28 : vector<1x8x16xi32>
    %c-1028477387_i32 = arith.constant -1028477387 : i32
    %30 = vector.broadcast %c-1028477387_i32 : i32 to vector<1x8x16xi32>
    %31 = arith.muli %29, %30 : vector<1x8x16xi32>
    %c16_i32_4 = arith.constant 16 : i32
    %32 = vector.broadcast %c16_i32_4 : i32 to vector<1x8x16xi32>
    %33 = arith.shrsi %31, %32 : vector<1x8x16xi32>
    %c65535_i32_5 = arith.constant 65535 : i32
    %34 = vector.broadcast %c65535_i32_5 : i32 to vector<1x8x16xi32>
    %35 = arith.andi %33, %34 : vector<1x8x16xi32>
    %36 = arith.xori %31, %35 : vector<1x8x16xi32>
    %c16777215_i32 = arith.constant 16777215 : i32
    %37 = vector.broadcast %c16777215_i32 : i32 to vector<1x8x16xi32>
    %38 = arith.andi %36, %37 : vector<1x8x16xi32>
    %39 = arith.sitofp %38 : vector<1x8x16xi32> to vector<1x8x16xf32>
    %cst = arith.constant 5.96046448E-8 : f32
    %40 = vector.broadcast %cst : f32 to vector<1x8x16xf32>
    %41 = arith.mulf %39, %40 : vector<1x8x16xf32>
    %cst_6 = arith.constant 9.99999968E-21 : f32
    %42 = vector.broadcast %cst_6 : f32 to vector<1x8x16xf32>
    %43 = arith.addf %41, %42 : vector<1x8x16xf32>
    %44 = math.log %43 : vector<1x8x16xf32>
    %cst_7 = arith.constant 0.000000e+00 : f32
    %45 = vector.broadcast %cst_7 : f32 to vector<1x8x16xf32>
    %46 = arith.subf %45, %44 : vector<1x8x16xf32>
    %cst_8 = arith.constant 9.99999968E-21 : f32
    %47 = vector.broadcast %cst_8 : f32 to vector<1x8x16xf32>
    %48 = arith.addf %46, %47 : vector<1x8x16xf32>
    %49 = math.log %48 : vector<1x8x16xf32>
    %cst_9 = arith.constant 0.000000e+00 : f32
    %50 = vector.broadcast %cst_9 : f32 to vector<1x8x16xf32>
    %51 = arith.subf %50, %49 : vector<1x8x16xf32>
    %cst_10 = arith.constant 5.000000e-02 : f32
    %52 = vector.broadcast %cst_10 : f32 to vector<1x8x16xf32>
    %53 = arith.mulf %52, %51 : vector<1x8x16xf32>
    %54 = arith.addf %1, %53 : vector<1x8x16xf32>
    %c0_11 = arith.constant 0 : index
    %c0_12 = arith.constant 0 : index
    %c0_13 = arith.constant 0 : index
    %55 = vector.load %arg5[%c0_11, %c0_12, %c0_13] : memref<1x8x16xf32, #tpu.memory_space<vmem>>, vector<1x8x16xf32>
    tpu.vector_store %arg5[%c0_11, %c0_12, %c0_13], %54 {strides = array<i32>} : memref<1x8x16xf32, #tpu.memory_space<vmem>>, vector<1x8x16xf32>,
    return
  }
  func.func @transform_0(%arg0: i32, %arg1: i32, %arg2: i32, %arg3: memref<1xi32, #tpu.memory_space<smem>>) -> (i32, i32, i32) {
    %c0_i32 = arith.constant 0 : i32
    %c0_i32_0 = arith.constant 0 : i32
    return %arg0, %arg1, %c0_i32 : i32, i32, i32
  }
  func.func @transform_1(%arg0: i32, %arg1: i32, %arg2: i32, %arg3: memref<1xi32, #tpu.memory_space<smem>>) -> (i32, i32, i32) {
    %c3_i32 = arith.constant 3 : i32
    %0 = arith.muli %arg0, %c3_i32 : i32
    %1 = arith.addi %0, %arg2 : i32
    %c0_i32 = arith.constant 0 : i32
    %c0_i32_0 = arith.constant 0 : i32
    return %1, %c0_i32, %arg1 : i32, i32, i32
  }
}

</mosaic_0001>

<llo_original>
// kernel: tpu_custom_call.1
$region0: #{tpu_custom_call.1}
  #allocation0 [shape = 'u32[]', space=smem, size = 0x4, offset = 0x4, fixed_abs, tag = 'smem constant byte address 0x4 - core index']
  #allocation1 [shape = 'u32[72,128]{1,0:T(1,128)}', space=vmem, size = 0x9000, scoped, tag = 'internal scratch']
  #allocation2 [shape = 's32[1]{0}', space=sflag, size = 0x4, scoped, tag = 'scoped memory for tpu_custom_call.1']
  #allocation3 [shape = 's32[1]{0:T(128)S(6)}', space=smem, size = 0x200, scoped, tag = 'prefetched SMEM operand 0']
  %s0 = inlined_call_operand.<no memory space> [shape: s32[1], index: 0, kind: input, shape index: {}]
  %s1 = inlined_call_operand.vmem [shape: f32[2,16,8], index: 1, kind: input, shape index: {}]
  %s2 = inlined_call_operand.hbm [shape: f32[6,8,16], index: 2, kind: output, shape index: {}]
  %s3 = sld [smem:[#allocation0]]
  $region37: #{tpu_custom_call.1} parent=0
    _
  %s5 = ssub.s32 1, %s3
  %s6 = scalar_select 0, %s5, %s3
  %7 = sst [smem:[#allocation3]] %s0
  $region1: #{tpu_custom_call.1} parent=0
    #allocation4 [shape = 'u8[8192]{0}', space=vmem, size = 0x2000, scoped, tag = 'output window, operand 0']
    #allocation5 [shape = 's32[2]{0}', space=sflag, size = 0x8, scoped, tag = 'scoped memory for tpu_custom_call.1']
    %8 = vsyncpa [#allocation5], 0
    %s9 = scalar_lea.sflag [#allocation5], 1
    %10 = vsyncpa %s9, 0
    loop: start=0, step=1, limit=8
    $region2: #{tpu_custom_call.1} parent=1 // loop_pre_header
      _
    $region3: #{tpu_custom_call.1} parent=1 // loop_header
      %s12 = sphi 0, %s16
      %p13 = scmp.ge.s32.totalorder %s12, 8
      %s19 = sphi 0, %s38
      %s20 = sphi 0, %s34
      %s21 = sphi 0, %s30
      %s22 = sphi 0, %s19
      %s23 = sphi 0, %s20
      %s24 = sphi 0, %s21
      %s25 = sphi 0, %s22
      %s26 = sphi 0, %s23
      %s27 = sphi 0, %s24
      %s43 = sphi 0, %s45
      %s46 = sphi 0, %s43
      %s47 = sphi 0, %s46
      %s63 = sphi 0, %s47
      %s75 = sphi 0, %s77
      %s78 = sphi 0, %s75
      %s79 = sphi 0, %s78
      %s95 = sphi 0, %s79
    $region4: #{tpu_custom_call.1} parent=1 // loop_header_branch
      %15 = sbr.rel (%p13) target = $region8
    $region5: #{tpu_custom_call.1} parent=1 // loop_body
      %s17 = ssub.s32 %s12, 1
      %s18 = ssub.s32 %s12, 2
      %s28 = sadd.s32 1, %s21
      %p29 = scmp.ge.s32.totalorder %s28, 3
      %s30 = scalar_select %p29, 0, %s28
      %s31 = sadd.s32 1, %s20
      %s32 = scalar_select %p29, %s31, %s20
      %p33 = scmp.ge.s32.totalorder %s32, 1
      %s34 = scalar_select %p33, 0, %s32
      %s35 = sadd.s32 1, %s19
      %s36 = scalar_select %p33, %s35, %s19
      %p37 = scmp.ge.s32.totalorder %s36, 2
      %s38 = scalar_select %p37, 0, %s36
      %s39 = ssub.s32 %s19, %s38
      %s40 = ssub.s32 %s20, %s34
      %s41 = sor.u32 %s39, %s40
      %p42 = scmp.eq.s32.totalorder %s41, 0
      %s44 = sadd.s32 %s43, 1
      %s45 = scalar_select %p42, %s43, %s44
      %p48 = pneg %p42
      %p49 = scmp.eq.s32.totalorder %s12, 5
      %p50 = por %p48, %p49
      %p51 = scmp.ne.s32.totalorder %s43, %s46
      %p52 = scmp.eq.s32.totalorder %s12, 0
      %p53 = por %p51, %p52
      %p54 = scmp.ne.s32.totalorder %s43, %s46
      %p55 = scmp.eq.s32.totalorder %s17, 5
      %p56 = por %p54, %p55
      %p57 = scmp.ne.s32.totalorder %s46, %s47
      %p58 = scmp.eq.s32.totalorder %s17, 0
      %p59 = por %p57, %p58
      %p60 = scmp.ne.s32.totalorder %s46, %s47
      %p61 = scmp.eq.s32.totalorder %s18, 5
      %p62 = por %p60, %p61
      %p64 = scmp.ne.s32.totalorder %s47, %s63
      %p65 = scmp.eq.s32.totalorder %s18, 0
      %p66 = por %p64, %p65
      %s67 = smul.u32 %s19, 3
      %s68 = sadd.s32 %s67, %s21
      %s69 = smul.u32 %s38, 3
      %s70 = sadd.s32 %s69, %s30
      %s71 = ssub.s32 %s68, %s70
      %s72 = ssub.s32 %s20, %s34
      %s73 = sor.u32 %s71, %s72
      %p74 = scmp.eq.s32.totalorder %s73, 0
      %s76 = sadd.s32 %s75, 1
      %s77 = scalar_select %p74, %s75, %s76
      %p80 = pneg %p74
      %p81 = scmp.eq.s32.totalorder %s12, 5
      %p82 = por %p80, %p81
      %p83 = scmp.ne.s32.totalorder %s75, %s78
      %p84 = scmp.eq.s32.totalorder %s12, 0
      %p85 = por %p83, %p84
      %p86 = scmp.ne.s32.totalorder %s75, %s78
      %p87 = scmp.eq.s32.totalorder %s17, 5
      %p88 = por %p86, %p87
      %p89 = scmp.ne.s32.totalorder %s78, %s79
      %p90 = scmp.eq.s32.totalorder %s17, 0
      %p91 = por %p89, %p90
      %p92 = scmp.ne.s32.totalorder %s78, %s79
      %p93 = scmp.eq.s32.totalorder %s18, 5
      %p94 = por %p92, %p93
      %p96 = scmp.ne.s32.totalorder %s79, %s95
      %p97 = scmp.eq.s32.totalorder %s18, 0
      %p98 = por %p96, %p97
      %p99 = scmp.le.s32.totalorder 1, %s12
      %p100 = scmp.lt.s32.totalorder %s12, 7
      %p101 = pnand %p99, %p100
      %p102 = pneg %p101
      // Predicated region
      $region9: #{tpu_custom_call.1} parent=5 // pred_check
        _
      $region10: #{tpu_custom_call.1} parent=5 // pred_check_branch
        %104 = sbr.rel (%p101) target = $region12
      $region11: #{tpu_custom_call.1} parent=5 // pred_region
        %s105 = ssub.s32 %s12, 1
      $region12: #{tpu_custom_call.1} parent=5 // pred_fallthru
        _
      %p106 = scmp.lt.s32.totalorder %s12, 6
      // Predicated region
      $region13: #{tpu_custom_call.1} parent=5 // pred_check
        %p107 = pneg %p106
      $region14: #{tpu_custom_call.1} parent=5 // pred_check_branch
        %109 = sbr.rel (%p107) target = $region16
      $region15: #{tpu_custom_call.1} parent=5 // pred_region
        // Predicated region
        $region17: #{tpu_custom_call.1} parent=15 // pred_check
          %p110 = pneg %p53
        $region18: #{tpu_custom_call.1} parent=15 // pred_check_branch
          %112 = sbr.rel (%p110) target = $region20
        $region19: #{tpu_custom_call.1} parent=15 // pred_region
          %s113 = smul.u32 2, %s20
          %p114 = scmp.lt.s32.totalorder %s19, 1
          %s115 = scalar_select %p114, %s19, 1
          %p116 = scmp.lt.s32.totalorder %s113, 1
          %s117 = scalar_select %p116, %s113, 1
          %s118 = smul.addr %s115, 2
          %s119 = sadd.s32 %s117, %s118
          %s120 = smul.addr %s119, 8
          %s121 = scalar_lea.vmem %s1, %s120
          %s122 = smul.u32 2, %s20
        $region20: #{tpu_custom_call.1} parent=15 // pred_fallthru
          _
      $region16: #{tpu_custom_call.1} parent=5 // pred_fallthru
        _
      %p123 = scmp.le.s32.totalorder 1, %s12
      %p124 = scmp.lt.s32.totalorder %s12, 7
      %p125 = pnand %p123, %p124
      %p126 = pneg %p125
      // Predicated region
      $region21: #{tpu_custom_call.1} parent=5 // pred_check
        _
      $region22: #{tpu_custom_call.1} parent=5 // pred_check_branch
        %128 = sbr.rel (%p125) target = $region24
      $region23: #{tpu_custom_call.1} parent=5 // pred_region
        %s129 = ssub.s32 %s12, 1
        %s130 = smul.u32 2, %s23
        %p131 = scmp.lt.s32.totalorder %s22, 1
        %s132 = scalar_select %p131, %s22, 1
        %p133 = scmp.lt.s32.totalorder %s130, 1
        %s134 = scalar_select %p133, %s130, 1
        %s135 = smul.addr %s132, 2
        %s136 = sadd.s32 %s134, %s135
        %s137 = smul.addr %s136, 8
        %s138 = scalar_lea.vmem %s1, %s137
        %p139 = pneg %p59
        %p140 = pneg %p56
        %p141 = pneg %p91
        %p142 = pneg %p88
        %s143 = sand.u32 %s78, 1
        %s144 = scalar_lea.sflag [#allocation5], %s143
        %s145 = sand.u32 %s78, 1
        %s146 = smul.addr %s145, 8
        %s147 = scalar_lea.vmem [#allocation4], %s146
        %s148 = smul.u32 2, %s23
        %p149 = scmp.lt.s32.totalorder %s22, 1
        %s150 = scalar_select %p149, %s22, 1
        %p151 = scmp.lt.s32.totalorder %s148, 1
        %s152 = scalar_select %p151, %s148, 1
        %s153 = smul.addr %s150, 2
        %s154 = sadd.s32 %s152, %s153
        %s155 = smul.addr %s154, 8
        %s156 = scalar_lea.vmem %s1, %s155
        %s157 = smul.u32 2, %s23
        %s158 = smul.u32 %s22, 3
        %s159 = sadd.s32 %s158, %s24
        %v160 = vld [vmem:[%s156] sm:$0xff]
        %v161 = vld [vmem:[%s156 + $0x8] sm:$0xff]
        %162 = vxpose.xlu0.b32.start [1/16] %v160, 128
        %163 = vxpose.xlu0.b32.cont [2/16] %v161, 128
        %164 = vxpose.xlu0.b32.cont [3/16] 0.0, 128
        %165 = vxpose.xlu0.b32.cont [4/16] 0.0, 128
        %166 = vxpose.xlu0.b32.cont [5/16] 0.0, 128
        %167 = vxpose.xlu0.b32.cont [6/16] 0.0, 128
        %168 = vxpose.xlu0.b32.cont [7/16] 0.0, 128
        %169 = vxpose.xlu0.b32.cont [8/16] 0.0, 128
        %170 = vxpose.xlu0.b32.cont [9/16] 0.0, 128
        %171 = vxpose.xlu0.b32.cont [10/16] 0.0, 128
        %172 = vxpose.xlu0.b32.cont [11/16] 0.0, 128
        %173 = vxpose.xlu0.b32.cont [12/16] 0.0, 128
        %174 = vxpose.xlu0.b32.cont [13/16] 0.0, 128
        %175 = vxpose.xlu0.b32.cont [14/16] 0.0, 128
        %176 = vxpose.xlu0.b32.cont [15/16] 0.0, 128
        %177 = vxpose.xlu0.b32.end [16/16] 0.0, 128
        %v178 = vpop.trf.xlu0
        %v179 = vpop.trf.xlu0
        %v180 = vpop.trf.xlu0
        %v181 = vpop.trf.xlu0
        %v182 = vpop.trf.xlu0
        %v183 = vpop.trf.xlu0
        %v184 = vpop.trf.xlu0
        %v185 = vpop.trf.xlu0
        %v186 = vpop.trf.xlu0
        %v187 = vpop.trf.xlu0
        %v188 = vpop.trf.xlu0
        %v189 = vpop.trf.xlu0
        %v190 = vpop.trf.xlu0
        %v191 = vpop.trf.xlu0
        %v192 = vpop.trf.xlu0
        %v193 = vpop.trf.xlu0
        %s194 = smul.u32 %s22, 3
        %s195 = sadd.s32 %s194, %s24
        %s196 = sadd.s32 %s195, %s23
        %s197 = smul.u32 %s196, 128
        %v198 = vlaneseq
        %v199 = vshrl.u32 %v198, 7
        %v200 = vlaneseq
        %v201 = vand.u32 %v200, 127
        %v202 = vmul.u32 %v199, 16
        %v203 = vstv %s197
        %v204 = vadd.s32 %v203, %v202
        %v205 = vadd.s32 %v204, %v201
        %s206 = sld [smem:[#allocation3]]
        %s207 = smul.u32 %s206, 2654435769
        %v208 = vstv %s207
        %v209 = vxor.u32 %v205, %v208
        %v210 = vshra.s32 %v209, 16
        %v211 = vand.u32 %v210, 65535
        %v212 = vxor.u32 %v209, %v211
        %v213 = vmul.u32 %v212, 2246822507
        %v214 = vshra.s32 %v213, 13
        %v215 = vand.u32 %v214, 524287
        %v216 = vxor.u32 %v213, %v215
        %v217 = vmul.u32 %v216, 3266489909
        %v218 = vshra.s32 %v217, 16
        %v219 = vand.u32 %v218, 65535
        %v220 = vxor.u32 %v217, %v219
        %v221 = vand.u32 %v220, 16777215
        %v222 = vcvt.s32.f32 %v221
        %v223 = vmul.f32 %v222, 5.9604645e-08
        %v224 = vadd.f32 %v223, 1e-20
        %v225 = vlog2.pop %v224
        %v226 = vmul.f32 %v225, 0.6931472
        %v227 = vsub.f32 0.0, %v226
        %v228 = vadd.f32 %v227, 1e-20
        %v229 = vlog2.pop %v228
        %v230 = vmul.f32 %v229, 0.6931472
        %v231 = vsub.f32 0.0, %v230
        %v232 = vmul.f32 %v231, 0.05
        %v233 = vadd.f32 %v178, %v232
        %vm234 = vcmask 130048
        %235 = vst.msk [vmem:[%s147] sm:$0xff] %vm234, %v233
        %s236 = sand.u32 %s78, 1
        %s237 = scalar_lea.sflag [#allocation5], %s236
        %s238 = sand.u32 %s78, 1
        %s239 = smul.addr %s238, 8
        %s240 = scalar_lea.vmem [#allocation4], %s239
        // Predicated region
        $region25: #{tpu_custom_call.1} parent=23 // pred_check
          %p241 = pneg %p88
        $region26: #{tpu_custom_call.1} parent=23 // pred_check_branch
          %243 = sbr.rel (%p241) target = $region28
        $region27: #{tpu_custom_call.1} parent=23 // pred_region
          %s244 = smul.u32 %s22, 3
          %s245 = sadd.s32 %s244, %s24
          %247 = vsyncadd %s237, 0
          %s248 = sadd.s32 %s23, %s245
          %s249 = smul.addr %s248, 8
          %s250 = scalar_lea.hbm %s2, %s249
          %s252 = sshll.u32 %s240, 4
          %s253 = int_to_ptr.vmem [resolvable:$true] %s252
          %s254 = sshll.u32 %s250, 4
          %s255 = int_to_ptr.hbm [resolvable:$true] %s254
          %257 = dma.vmem_to_hbm [thread:$0]  %s253, 128, %s255, %s237
        $region28: #{tpu_custom_call.1} parent=23 // pred_fallthru
          _
      $region24: #{tpu_custom_call.1} parent=5 // pred_fallthru
        _
      %p258 = scmp.le.s32.totalorder 2, %s12
      // Predicated region
      $region29: #{tpu_custom_call.1} parent=5 // pred_check
        %p259 = pneg %p258
      $region30: #{tpu_custom_call.1} parent=5 // pred_check_branch
        %261 = sbr.rel (%p259) target = $region32
      $region31: #{tpu_custom_call.1} parent=5 // pred_region
        %s262 = ssub.s32 %s12, 2
        // Predicated region
        $region33: #{tpu_custom_call.1} parent=31 // pred_check
          %p263 = pneg %p94
        $region34: #{tpu_custom_call.1} parent=31 // pred_check_branch
          %265 = sbr.rel (%p263) target = $region36
        $region35: #{tpu_custom_call.1} parent=31 // pred_region
          %s266 = sand.u32 %s79, 1
          %s267 = scalar_lea.sflag [#allocation5], %s266
          %s268 = sand.u32 %s79, 1
          %s269 = smul.addr %s268, 8
          %s270 = scalar_lea.vmem [#allocation4], %s269
          %272 = dma.done %s267, 128
        $region36: #{tpu_custom_call.1} parent=31 // pred_fallthru
          _
      $region32: #{tpu_custom_call.1} parent=5 // pred_fallthru
        _
    $region6: #{tpu_custom_call.1} parent=1 // loop_footer
      %s16 = sadd.s32 1, %s12
    $region7: #{tpu_custom_call.1} parent=1 // loop_footer_branch
      %11 = sbr.rel target = $region3
    $region8: #{tpu_custom_call.1} parent=1 // loop_exit
      _
    %273 = vsyncpa [#allocation5], 1
    %s274 = scalar_lea.sflag [#allocation5], 1
    %275 = vsyncpa %s274, 1

</llo_original>
